<compile_context>
chip_gen: v5e
topology: v5e:2x2
jax: 0.10.0
libtpu: 0.0.40
codegen_flags: <defaults>
</compile_context>

<pallas_src>
import functools
import numpy as np

import jax
import jax.numpy as jnp
from jax.experimental import pallas as pl
from jax.experimental.pallas import tpu as pltpu

SET_SIZE = 100          # hardcoded in HungarianMatcher.__init__
SET_PAD = 128           # lane-dense padding of the set dimension
N_HID = 256             # v1 encoder hardcodes Linear(256*3, 256) / LayerNorm(256)
CTX_DIM = 2048          # v1 encoder hardcodes ctx_emb n_inp=2048
NUM_CLASSES = 8
LN_EPS = 1e-5
ROW_TILE = 128          # MXU-native row tile for the fused encoder kernel


# ----------------------- in-kernel helpers -----------------------

def _ln(y, g, beta):
    """LayerNorm over the last dim, strictly in f32."""
    mu = jnp.mean(y, axis=-1, keepdims=True)
    var = jnp.mean(jnp.square(y - mu), axis=-1, keepdims=True)
    return (y - mu) * jax.lax.rsqrt(var + LN_EPS) * g + beta


def _lin_ln(x, w_ref, b_ref, g_ref, beta_ref, relu):
    """y = LayerNorm(x @ W + b); bf16 MXU operands, f32 accumulate + epilogue."""
    y = jnp.dot(x.astype(jnp.bfloat16), w_ref[...],
                preferred_element_type=jnp.float32) + b_ref[...]
    y = _ln(y, g_ref[...], beta_ref[...])
    if relu:
        y = jnp.maximum(y, 0.0)
    return y


# ----------------------- Pallas kernels -----------------------

def _mlp3_kernel(x_ref,
                 w1, b1, g1, be1,
                 w2, b2, g2, be2,
                 w3, b3, g3, be3,
                 o_ref):
    """Fused MLPLNReLU(3 layers, last_norm=True, last_relu=False)."""
    h = _lin_ln(x_ref[...], w1, b1, g1, be1, True)
    h = _lin_ln(h, w2, b2, g2, be2, True)
    o_ref[...] = _lin_ln(h, w3, b3, g3, be3, False)


def mlp3_ln(x, layers):
    """x: [N, Din] (N small, multiple of 8) -> [N, 256]; one grid step."""
    N, Din = x.shape
    Dout = layers[-1][0].shape[1]
    flat = [p for layer in layers for p in layer]
    flops = 2 * N * (Din * N_HID + 2 * N_HID * N_HID)
    bytes_acc = 4 * N * (Din + Dout) + sum(int(p.size) * p.dtype.itemsize for p in flat)
    return pl.pallas_call(
        _mlp3_kernel,
        out_shape=jax.ShapeDtypeStruct((N, Dout), jnp.float32),
        grid=(1,),
        in_specs=[pl.BlockSpec((N, Din), lambda i: (0, 0))]
                 + [pl.BlockSpec(p.shape, lambda i: (0, 0)) for p in flat],
        out_specs=pl.BlockSpec((N, Dout), lambda i: (0, 0)),
        compiler_params=pltpu.CompilerParams(dimension_semantics=("arbitrary",)),
        cost_estimate=pl.CostEstimate(flops=flops, transcendentals=6 * N,
                                      bytes_accessed=bytes_acc),
    )(x, *flat)


def _encoder_kernel(x1_ref, bbox_ref, keep_ref, x3_ref,
                    wb1, bb1, gb1, beb1,
                    wb2, bb2, gb2, beb2,
                    wb3, bb3, gb3, beb3,
                    wm1, wm2, wm3, bm, gm, bem,
                    o_ref):
    """bbox MLP (3 layers) + no-object masking + split merge matmul + LayerNorm."""
    h = _lin_ln(bbox_ref[...], wb1, bb1, gb1, beb1, True)
    h = _lin_ln(h, wb2, bb2, gb2, beb2, True)
    h = _lin_ln(h, wb3, bb3, gb3, beb3, False)
    x2 = h * keep_ref[...]                  # zero bbox embedding of no-object rows (post-MLP, as in reference)
    # concat(x1, x2, x3) @ W_merge  ==  x1 @ W1 + x2 @ W2 + x3 @ W3
    y = jnp.dot(x1_ref[...].astype(jnp.bfloat16), wm1[...],
                preferred_element_type=jnp.float32)
    y = y + jnp.dot(x2.astype(jnp.bfloat16), wm2[...],
                    preferred_element_type=jnp.float32)
    y = y + jnp.dot(x3_ref[...].astype(jnp.bfloat16), wm3[...],
                    preferred_element_type=jnp.float32)
    y = y + bm[...]
    o_ref[...] = _ln(y, gm[...], bem[...])


def encode_gt(x1, bbox, keep, x3, bbox_layers, merge):
    """x1,x3: [N,256]; bbox: [N,4]; keep: [N,1] -> gt [N,256]. N % 128 == 0."""
    N = x1.shape[0]
    assert N % ROW_TILE == 0
    weights = [p for layer in bbox_layers for p in layer] + list(merge)
    row_specs = [
        pl.BlockSpec((ROW_TILE, N_HID), lambda i: (i, 0)),   # x1 (cls emb, gathered)
        pl.BlockSpec((ROW_TILE, 4), lambda i: (i, 0)),        # bbox
        pl.BlockSpec((ROW_TILE, 1), lambda i: (i, 0)),        # keep mask
        pl.BlockSpec((ROW_TILE, N_HID), lambda i: (i, 0)),   # x3 (ctx emb, broadcast)
    ]
    w_specs = [pl.BlockSpec(p.shape, lambda i: (0, 0)) for p in weights]
    flops = 2 * N * (4 * N_HID + 2 * N_HID * N_HID + 3 * N_HID * N_HID)
    bytes_acc = (4 * N * (2 * N_HID + 4 + 1 + N_HID)
                 + sum(int(p.size) * p.dtype.itemsize for p in weights))
    return pl.pallas_call(
        _encoder_kernel,
        out_shape=jax.ShapeDtypeStruct((N, N_HID), jnp.float32),
        grid=(N // ROW_TILE,),
        in_specs=row_specs + w_specs,
        out_specs=pl.BlockSpec((ROW_TILE, N_HID), lambda i: (i, 0)),
        compiler_params=pltpu.CompilerParams(dimension_semantics=("parallel",)),
        cost_estimate=pl.CostEstimate(flops=flops, transcendentals=8 * N,
                                      bytes_accessed=bytes_acc),
    )(x1, bbox, keep, x3, *weights)


def _pairwise_mse_kernel(gt_ref, pred_ref, o_ref, *, h_dim):
    """dists[i, j] = mean_h (gt[i, h] - pred[j, h])**2 for one batch element (f32)."""
    gt = gt_ref[0]            # (Sp, H)
    pr = pred_ref[0]          # (Sp, H)
    cross = jax.lax.dot_general(
        gt, pr, (((1,), (1,)), ((), ())), preferred_element_type=jnp.float32)  # (Sp, Sp)
    gt2 = jnp.sum(gt * gt, axis=-1, keepdims=True)   # (Sp, 1)
    pr2 = jnp.sum(pr * pr, axis=-1, keepdims=True)   # (Sp, 1)
    d = (gt2 + pr2.T - 2.0 * cross) * (1.0 / h_dim)
    o_ref[0] = jnp.maximum(d, 0.0)                   # clamp cancellation negatives


def pairwise_mse(gt, pred):
    """gt, pred: [B, Sp, H] (Sp multiple of 128) -> dists [B, Sp, Sp]."""
    B, Sp, H = gt.shape
    kernel = functools.partial(_pairwise_mse_kernel, h_dim=H)
    return pl.pallas_call(
        kernel,
        out_shape=jax.ShapeDtypeStruct((B, Sp, Sp), jnp.float32),
        grid=(B,),
        in_specs=[
            pl.BlockSpec((1, Sp, H), lambda b: (b, 0, 0)),
            pl.BlockSpec((1, Sp, H), lambda b: (b, 0, 0)),
        ],
        out_specs=pl.BlockSpec((1, Sp, Sp), lambda b: (b, 0, 0)),
        compiler_params=pltpu.CompilerParams(dimension_semantics=("parallel",)),
        cost_estimate=pl.CostEstimate(flops=2 * B * Sp * Sp * H, transcendentals=0,
                                      bytes_accessed=4 * B * (2 * Sp * H + Sp * Sp)),
    )(gt, pred)


# ----------------------- parameters (deterministic) -----------------------

def _linear_ln_params(key, din, dout):
    w = (jax.random.normal(key, (din, dout), jnp.float32)
         * (1.0 / np.sqrt(din))).astype(jnp.bfloat16)          # bf16 MXU operand
    b = jnp.zeros((1, dout), jnp.float32)
    g = jnp.ones((1, dout), jnp.float32)
    beta = jnp.zeros((1, dout), jnp.float32)
    return (w, b, g, beta)


def _mlp_params(key, din, dhid, n_layer=3):
    keys = jax.random.split(key, n_layer)
    dims = [din] + [dhid] * n_layer
    return [_linear_ln_params(keys[i], dims[i], dims[i + 1]) for i in range(n_layer)]


def init_params(key):
    keys = jax.random.split(key, 7)
    # merge Linear(256*3, 256) stored pre-split into three 256x256 blocks
    wm1 = (jax.random.normal(keys[4], (N_HID, N_HID), jnp.float32)
           * (1.0 / np.sqrt(3 * N_HID))).astype(jnp.bfloat16)
    wm2 = (jax.random.normal(keys[5], (N_HID, N_HID), jnp.float32)
           * (1.0 / np.sqrt(3 * N_HID))).astype(jnp.bfloat16)
    wm3 = (jax.random.normal(keys[6], (N_HID, N_HID), jnp.float32)
           * (1.0 / np.sqrt(3 * N_HID))).astype(jnp.bfloat16)
    bm = jnp.zeros((1, N_HID), jnp.float32)
    gm = jnp.ones((1, N_HID), jnp.float32)
    bem = jnp.zeros((1, N_HID), jnp.float32)
    return dict(
        cls_table=jax.random.normal(keys[0], (NUM_CLASSES + 1, N_HID), jnp.float32) * 0.02,
        cls_mlp=_mlp_params(keys[1], N_HID, N_HID),
        bbox_mlp=_mlp_params(keys[2], 4, N_HID),
        ctx_mlp=_mlp_params(keys[3], CTX_DIM, N_HID),
        merge=(wm1, wm2, wm3, bm, gm, bem),
    )


# ----------------------- forward (glue + kernel calls) -----------------------

def hungarian_matcher_forward(params, pred_features, bb, target_ids, target_bbox,
                              w_gt_pred=1.0, w_pred_gt=1.0, ignore_nocls_bbox=True,
                              pi=None, dists_bias=None):
    B, Q, H = pred_features.shape
    S, Sp = SET_SIZE, SET_PAD
    assert Q == S and H == N_HID

    # AdaptiveAvgPool2d((1,1)) over NCHW backbone features -> [B, C]  (glue)
    img_features = jnp.mean(bb, axis=(2, 3))

    # --- cls branch: MLP once over the (padded) class table, then gather ---
    n_cls = NUM_CLASSES + 1
    cls_rows = int(np.ceil(n_cls / 8) * 8)
    cls_tab = jnp.zeros((cls_rows, N_HID), jnp.float32).at[:n_cls].set(params['cls_table'])
    cls_emb = mlp3_ln(cls_tab, params['cls_mlp'])                     # [16, 256]

    # --- ctx branch: 2048-wide MLP once per batch element ---
    b_rows = int(np.ceil(B / 8) * 8)
    ctx_in = jnp.zeros((b_rows, CTX_DIM), jnp.float32).at[:B].set(img_features)
    ctx_emb = mlp3_ln(ctx_in, params['ctx_mlp'])[:B]                  # [B, 256]

    # --- pad set dim 100 -> 128 so every tile is (8,128)/MXU aligned ---
    ids_pad = jnp.full((B, Sp), NUM_CLASSES, jnp.int32).at[:, :S].set(target_ids.astype(jnp.int32))
    bbox_pad = jnp.zeros((B, Sp, 4), jnp.float32).at[:, :S].set(target_bbox)
    ids_flat = ids_pad.reshape(B * Sp)
    bbox_flat = bbox_pad.reshape(B * Sp, 4)
    no_object = ids_flat == NUM_CLASSES

    x1 = jnp.take(cls_emb, ids_flat, axis=0)                                   # [B*Sp, 256]
    x3 = jnp.broadcast_to(ctx_emb[:, None, :], (B, Sp, N_HID)).reshape(B * Sp, N_HID)
    if ignore_nocls_bbox:
        keep = (~no_object).astype(jnp.float32)[:, None]                        # [B*Sp, 1]
    else:
        keep = jnp.ones((B * Sp, 1), jnp.float32)

    # --- fused bbox MLP + merge projection + LayerNorm (Pallas) ---
    gt = encode_gt(x1, bbox_flat, keep, x3, params['bbox_mlp'], params['merge'])
    gt = gt.reshape(B, Sp, N_HID)

    # --- pairwise distances (Pallas, MXU, lane-dense 128x128 output) ---
    pred_pad = jnp.zeros((B, Sp, N_HID), jnp.float32).at[:, :S].set(
        pred_features.astype(jnp.float32))
    dists = pairwise_mse(gt, pred_pad)[:, :S, :S]
    if dists_bias is not None:
        dists = dists + dists_bias

    # TODO(synk): exact Hungarian assignment (scipy.optimize.linear_sum_assignment) is a
    # sequential combinatorial algorithm with no clean Pallas equivalent; approximated
    # here with a per-row argmin (pi, if provided, is honored like in the module).
    if pi is None:
        R_i = jnp.argmin(dists, axis=-1)                      # [B, S]
    else:
        R_i = pi
    R_pi = jnp.take_along_axis(pred_features, R_i[..., None], axis=1)   # [B, S, H]

    matched = jnp.take_along_axis(dists, R_i[..., None], axis=-1)[..., 0]  # [B, S]
    loss_br = jnp.mean(matched)                  # gt -> pred direction
    loss_rb = jnp.mean(jnp.min(dists, axis=1))   # pred -> gt direction
    loss = w_gt_pred * loss_br + w_pred_gt * loss_rb

    true_object_loc = jnp.nonzero(target_ids.reshape(-1) != NUM_CLASSES,
                                  size=B * S, fill_value=-1)
    return {'true_object_loc': true_object_loc, 'feat': R_pi, 'pi': R_i,
            'loss': loss, 'dists': dists}


# ----------------------- demo -----------------------

if __name__ == "__main__":
    key = jax.random.PRNGKey(0)
    kp, kf, kb = jax.random.split(key, 3)
    params = init_params(kp)

    B = 2
    pred_features = jax.random.normal(kf, (B, SET_SIZE, N_HID), jnp.float32)
    bb = jax.random.normal(kb, (B, CTX_DIM, 4, 4), jnp.float32)   # NCHW backbone features

    # Build padded target tensors (the torch per-image list loop -> host glue).
    rng = np.random.default_rng(0)
    target_ids = np.full((B, SET_SIZE), NUM_CLASSES, dtype=np.int32)
    target_bbox = np.zeros((B, SET_SIZE, 4), dtype=np.float32)
    n_obj = [3, 5]
    for b in range(B):
        target_ids[b, :n_obj[b]] = rng.integers(0, NUM_CLASSES, size=n_obj[b])
        target_bbox[b, :n_obj[b]] = rng.random((n_obj[b], 4)).astype(np.float32)

    out = hungarian_matcher_forward(
        params, pred_features, bb, jnp.asarray(target_ids), jnp.asarray(target_bbox))
    jax.block_until_ready(out)

    assert out['feat'].shape == (B, SET_SIZE, N_HID)
    assert out['dists'].shape == (B, SET_SIZE, SET_SIZE)
    assert out['pi'].shape == (B, SET_SIZE)
    assert np.isfinite(float(out['loss']))
    print("KERNEL_OK")
</pallas_src>

<mosaic_0001>
module attributes {stable_mosaic.version = 11 : i64} {
  func.func @_mlp3_kernel(%arg0: i32, %arg1: memref<16x256xf32, #tpu.memory_space<vmem>>, %arg2: memref<256x256xbf16, #tpu.memory_space<vmem>>, %arg3: memref<1x256xf32, #tpu.memory_space<vmem>>, %arg4: memref<1x256xf32, #tpu.memory_space<vmem>>, %arg5: memref<1x256xf32, #tpu.memory_space<vmem>>, %arg6: memref<256x256xbf16, #tpu.memory_space<vmem>>, %arg7: memref<1x256xf32, #tpu.memory_space<vmem>>, %arg8: memref<1x256xf32, #tpu.memory_space<vmem>>, %arg9: memref<1x256xf32, #tpu.memory_space<vmem>>, %arg10: memref<256x256xbf16, #tpu.memory_space<vmem>>, %arg11: memref<1x256xf32, #tpu.memory_space<vmem>>, %arg12: memref<1x256xf32, #tpu.memory_space<vmem>>, %arg13: memref<1x256xf32, #tpu.memory_space<vmem>>, %arg14: memref<16x256xf32, #tpu.memory_space<vmem>>) attributes {dimension_semantics = [#tpu.dimension_semantics<arbitrary>], iteration_bounds = array<i64: 1>, scalar_prefetch = 0 : i64, scratch_operands = 0 : i64, tpu.core_type = #tpu.core_type<tc>, window_params = [{pipeline_mode = #tpu.pipeline_mode<synchronous>, transform_indices = @transform_0, window_bounds = array<i64: 16, 256>}, {pipeline_mode = #tpu.pipeline_mode<synchronous>, transform_indices = @transform_1, window_bounds = array<i64: 256, 256>}, {pipeline_mode = #tpu.pipeline_mode<synchronous>, transform_indices = @transform_2, window_bounds = array<i64: 1, 256>}, {pipeline_mode = #tpu.pipeline_mode<synchronous>, transform_indices = @transform_3, window_bounds = array<i64: 1, 256>}, {pipeline_mode = #tpu.pipeline_mode<synchronous>, transform_indices = @transform_4, window_bounds = array<i64: 1, 256>}, {pipeline_mode = #tpu.pipeline_mode<synchronous>, transform_indices = @transform_5, window_bounds = array<i64: 256, 256>}, {pipeline_mode = #tpu.pipeline_mode<synchronous>, transform_indices = @transform_6, window_bounds = array<i64: 1, 256>}, {pipeline_mode = #tpu.pipeline_mode<synchronous>, transform_indices = @transform_7, window_bounds = array<i64: 1, 256>}, {pipeline_mode = #tpu.pipeline_mode<synchronous>, transform_indices = @transform_8, window_bounds = array<i64: 1, 256>}, {pipeline_mode = #tpu.pipeline_mode<synchronous>, transform_indices = @transform_9, window_bounds = array<i64: 256, 256>}, {pipeline_mode = #tpu.pipeline_mode<synchronous>, transform_indices = @transform_10, window_bounds = array<i64: 1, 256>}, {pipeline_mode = #tpu.pipeline_mode<synchronous>, transform_indices = @transform_11, window_bounds = array<i64: 1, 256>}, {pipeline_mode = #tpu.pipeline_mode<synchronous>, transform_indices = @transform_12, window_bounds = array<i64: 1, 256>}, {pipeline_mode = #tpu.pipeline_mode<synchronous>, transform_indices = @transform_13, window_bounds = array<i64: 16, 256>}]} {
    %c0 = arith.constant 0 : index
    %c0_0 = arith.constant 0 : index
    %0 = vector.load %arg1[%c0, %c0_0] : memref<16x256xf32, #tpu.memory_space<vmem>>, vector<16x256xf32>
    %1 = arith.truncf %0 : vector<16x256xf32> to vector<16x256xbf16>
    %c0_1 = arith.constant 0 : index
    %c0_2 = arith.constant 0 : index
    %2 = vector.load %arg2[%c0_1, %c0_2] : memref<256x256xbf16, #tpu.memory_space<vmem>>, vector<256x256xbf16>
    %cst = arith.constant dense<0.000000e+00> : vector<16x256xf32>
    %3 = tpu.matmul %1, %2, %cst {dimension_numbers = #tpu.dot_dimension_numbers<[1], [0], [0], [1], [0, 0, 1, 1], [], []>} : vector<16x256xbf16>, vector<256x256xbf16>, vector<16x256xf32> -> vector<16x256xf32>
    %c0_3 = arith.constant 0 : index
    %c0_4 = arith.constant 0 : index
    %4 = vector.load %arg3[%c0_3, %c0_4] : memref<1x256xf32, #tpu.memory_space<vmem>>, vector<1x256xf32>
    %5 = vector.broadcast %4 : vector<1x256xf32> to vector<16x256xf32>
    %6 = arith.addf %3, %5 : vector<16x256xf32>
    %c0_5 = arith.constant 0 : index
    %c0_6 = arith.constant 0 : index
    %7 = vector.load %arg4[%c0_5, %c0_6] : memref<1x256xf32, #tpu.memory_space<vmem>>, vector<1x256xf32>
    %c0_7 = arith.constant 0 : index
    %c0_8 = arith.constant 0 : index
    %8 = vector.load %arg5[%c0_7, %c0_8] : memref<1x256xf32, #tpu.memory_space<vmem>>, vector<1x256xf32>
    %cst_9 = arith.constant dense<0.000000e+00> : vector<16xf32>
    %9 = vector.multi_reduction <add>, %6, %cst_9 [1] : vector<16x256xf32> to vector<16xf32>
    %10 = vector.shape_cast %9 : vector<16xf32> to vector<16x1xf32>
    %cst_10 = arith.constant 2.560000e+02 : f32
    %11 = vector.broadcast %cst_10 : f32 to vector<16x1xf32>
    %12 = arith.divf %10, %11 : vector<16x1xf32>
    %13 = vector.broadcast %12 : vector<16x1xf32> to vector<16x256xf32>
    %14 = arith.subf %6, %13 : vector<16x256xf32>
    %15 = arith.mulf %14, %14 : vector<16x256xf32>
    %cst_11 = arith.constant dense<0.000000e+00> : vector<16xf32>
    %16 = vector.multi_reduction <add>, %15, %cst_11 [1] : vector<16x256xf32> to vector<16xf32>
    %17 = vector.shape_cast %16 : vector<16xf32> to vector<16x1xf32>
    %cst_12 = arith.constant 2.560000e+02 : f32
    %18 = vector.broadcast %cst_12 : f32 to vector<16x1xf32>
    %19 = arith.divf %17, %18 : vector<16x1xf32>
    %20 = vector.broadcast %12 : vector<16x1xf32> to vector<16x256xf32>
    %21 = arith.subf %6, %20 : vector<16x256xf32>
    %cst_13 = arith.constant 9.99999974E-6 : f32
    %22 = vector.broadcast %cst_13 : f32 to vector<16x1xf32>
    %23 = arith.addf %19, %22 : vector<16x1xf32>
    %24 = math.rsqrt %23 : vector<16x1xf32>
    %25 = vector.broadcast %24 : vector<16x1xf32> to vector<16x256xf32>
    %26 = arith.mulf %21, %25 : vector<16x256xf32>
    %27 = vector.broadcast %7 : vector<1x256xf32> to vector<16x256xf32>
    %28 = arith.mulf %26, %27 : vector<16x256xf32>
    %29 = vector.broadcast %8 : vector<1x256xf32> to vector<16x256xf32>
    %30 = arith.addf %28, %29 : vector<16x256xf32>
    %cst_14 = arith.constant 0.000000e+00 : f32
    %31 = vector.broadcast %cst_14 : f32 to vector<16x256xf32>
    %32 = arith.maximumf %30, %31 : vector<16x256xf32>
    %33 = arith.truncf %32 : vector<16x256xf32> to vector<16x256xbf16>
    %c0_15 = arith.constant 0 : index
    %c0_16 = arith.constant 0 : index
    %34 = vector.load %arg6[%c0_15, %c0_16] : memref<256x256xbf16, #tpu.memory_space<vmem>>, vector<256x256xbf16>
    %cst_17 = arith.constant dense<0.000000e+00> : vector<16x256xf32>
    %35 = tpu.matmul %33, %34, %cst_17 {dimension_numbers = #tpu.dot_dimension_numbers<[1], [0], [0], [1], [0, 0, 1, 1], [], []>} : vector<16x256xbf16>, vector<256x256xbf16>, vector<16x256xf32> -> vector<16x256xf32>
    %c0_18 = arith.constant 0 : index
    %c0_19 = arith.constant 0 : index
    %36 = vector.load %arg7[%c0_18, %c0_19] : memref<1x256xf32, #tpu.memory_space<vmem>>, vector<1x256xf32>
    %37 = vector.broadcast %36 : vector<1x256xf32> to vector<16x256xf32>
    %38 = arith.addf %35, %37 : vector<16x256xf32>
    %c0_20 = arith.constant 0 : index
    %c0_21 = arith.constant 0 : index
    %39 = vector.load %arg8[%c0_20, %c0_21] : memref<1x256xf32, #tpu.memory_space<vmem>>, vector<1x256xf32>
    %c0_22 = arith.constant 0 : index
    %c0_23 = arith.constant 0 : index
    %40 = vector.load %arg9[%c0_22, %c0_23] : memref<1x256xf32, #tpu.memory_space<vmem>>, vector<1x256xf32>
    %cst_24 = arith.constant dense<0.000000e+00> : vector<16xf32>
    %41 = vector.multi_reduction <add>, %38, %cst_24 [1] : vector<16x256xf32> to vector<16xf32>
    %42 = vector.shape_cast %41 : vector<16xf32> to vector<16x1xf32>
    %cst_25 = arith.constant 2.560000e+02 : f32
    %43 = vector.broadcast %cst_25 : f32 to vector<16x1xf32>
    %44 = arith.divf %42, %43 : vector<16x1xf32>
    %45 = vector.broadcast %44 : vector<16x1xf32> to vector<16x256xf32>
    %46 = arith.subf %38, %45 : vector<16x256xf32>
    %47 = arith.mulf %46, %46 : vector<16x256xf32>
    %cst_26 = arith.constant dense<0.000000e+00> : vector<16xf32>
    %48 = vector.multi_reduction <add>, %47, %cst_26 [1] : vector<16x256xf32> to vector<16xf32>
    %49 = vector.shape_cast %48 : vector<16xf32> to vector<16x1xf32>
    %cst_27 = arith.constant 2.560000e+02 : f32
    %50 = vector.broadcast %cst_27 : f32 to vector<16x1xf32>
    %51 = arith.divf %49, %50 : vector<16x1xf32>
    %52 = vector.broadcast %44 : vector<16x1xf32> to vector<16x256xf32>
    %53 = arith.subf %38, %52 : vector<16x256xf32>
    %cst_28 = arith.constant 9.99999974E-6 : f32
    %54 = vector.broadcast %cst_28 : f32 to vector<16x1xf32>
    %55 = arith.addf %51, %54 : vector<16x1xf32>
    %56 = math.rsqrt %55 : vector<16x1xf32>
    %57 = vector.broadcast %56 : vector<16x1xf32> to vector<16x256xf32>
    %58 = arith.mulf %53, %57 : vector<16x256xf32>
    %59 = vector.broadcast %39 : vector<1x256xf32> to vector<16x256xf32>
    %60 = arith.mulf %58, %59 : vector<16x256xf32>
    %61 = vector.broadcast %40 : vector<1x256xf32> to vector<16x256xf32>
    %62 = arith.addf %60, %61 : vector<16x256xf32>
    %cst_29 = arith.constant 0.000000e+00 : f32
    %63 = vector.broadcast %cst_29 : f32 to vector<16x256xf32>
    %64 = arith.maximumf %62, %63 : vector<16x256xf32>
    %65 = arith.truncf %64 : vector<16x256xf32> to vector<16x256xbf16>
    %c0_30 = arith.constant 0 : index
    %c0_31 = arith.constant 0 : index
    %66 = vector.load %arg10[%c0_30, %c0_31] : memref<256x256xbf16, #tpu.memory_space<vmem>>, vector<256x256xbf16>
    %cst_32 = arith.constant dense<0.000000e+00> : vector<16x256xf32>
    %67 = tpu.matmul %65, %66, %cst_32 {dimension_numbers = #tpu.dot_dimension_numbers<[1], [0], [0], [1], [0, 0, 1, 1], [], []>} : vector<16x256xbf16>, vector<256x256xbf16>, vector<16x256xf32> -> vector<16x256xf32>
    %c0_33 = arith.constant 0 : index
    %c0_34 = arith.constant 0 : index
    %68 = vector.load %arg11[%c0_33, %c0_34] : memref<1x256xf32, #tpu.memory_space<vmem>>, vector<1x256xf32>
    %69 = vector.broadcast %68 : vector<1x256xf32> to vector<16x256xf32>
    %70 = arith.addf %67, %69 : vector<16x256xf32>
    %c0_35 = arith.constant 0 : index
    %c0_36 = arith.constant 0 : index
    %71 = vector.load %arg12[%c0_35, %c0_36] : memref<1x256xf32, #tpu.memory_space<vmem>>, vector<1x256xf32>
    %c0_37 = arith.constant 0 : index
    %c0_38 = arith.constant 0 : index
    %72 = vector.load %arg13[%c0_37, %c0_38] : memref<1x256xf32, #tpu.memory_space<vmem>>, vector<1x256xf32>
    %cst_39 = arith.constant dense<0.000000e+00> : vector<16xf32>
    %73 = vector.multi_reduction <add>, %70, %cst_39 [1] : vector<16x256xf32> to vector<16xf32>
    %74 = vector.shape_cast %73 : vector<16xf32> to vector<16x1xf32>
    %cst_40 = arith.constant 2.560000e+02 : f32
    %75 = vector.broadcast %cst_40 : f32 to vector<16x1xf32>
    %76 = arith.divf %74, %75 : vector<16x1xf32>
    %77 = vector.broadcast %76 : vector<16x1xf32> to vector<16x256xf32>
    %78 = arith.subf %70, %77 : vector<16x256xf32>
    %79 = arith.mulf %78, %78 : vector<16x256xf32>
    %cst_41 = arith.constant dense<0.000000e+00> : vector<16xf32>
    %80 = vector.multi_reduction <add>, %79, %cst_41 [1] : vector<16x256xf32> to vector<16xf32>
    %81 = vector.shape_cast %80 : vector<16xf32> to vector<16x1xf32>
    %cst_42 = arith.constant 2.560000e+02 : f32
    %82 = vector.broadcast %cst_42 : f32 to vector<16x1xf32>
    %83 = arith.divf %81, %82 : vector<16x1xf32>
    %84 = vector.broadcast %76 : vector<16x1xf32> to vector<16x256xf32>
    %85 = arith.subf %70, %84 : vector<16x256xf32>
    %cst_43 = arith.constant 9.99999974E-6 : f32
    %86 = vector.broadcast %cst_43 : f32 to vector<16x1xf32>
    %87 = arith.addf %83, %86 : vector<16x1xf32>
    %88 = math.rsqrt %87 : vector<16x1xf32>
    %89 = vector.broadcast %88 : vector<16x1xf32> to vector<16x256xf32>
    %90 = arith.mulf %85, %89 : vector<16x256xf32>
    %91 = vector.broadcast %71 : vector<1x256xf32> to vector<16x256xf32>
    %92 = arith.mulf %90, %91 : vector<16x256xf32>
    %93 = vector.broadcast %72 : vector<1x256xf32> to vector<16x256xf32>
    %94 = arith.addf %92, %93 : vector<16x256xf32>
    %c0_44 = arith.constant 0 : index
    %c0_45 = arith.constant 0 : index
    %95 = vector.load %arg14[%c0_44, %c0_45] : memref<16x256xf32, #tpu.memory_space<vmem>>, vector<16x256xf32>
    tpu.vector_store %arg14[%c0_44, %c0_45], %94 {strides = array<i32>} : memref<16x256xf32, #tpu.memory_space<vmem>>, vector<16x256xf32>,
    return
  }
  func.func @transform_0(%arg0: i32) -> (i32, i32) {
    %c0_i32 = arith.constant 0 : i32
    %c0_i32_0 = arith.constant 0 : i32
    %c0_i32_1 = arith.constant 0 : i32
    return %c0_i32, %c0_i32_0 : i32, i32
  }
  func.func @transform_1(%arg0: i32) -> (i32, i32) {
    %c0_i32 = arith.constant 0 : i32
    %c0_i32_0 = arith.constant 0 : i32
    %c0_i32_1 = arith.constant 0 : i32
    return %c0_i32, %c0_i32_0 : i32, i32
  }
  func.func @transform_2(%arg0: i32) -> (i32, i32) {
    %c0_i32 = arith.constant 0 : i32
    %c0_i32_0 = arith.constant 0 : i32
    %c0_i32_1 = arith.constant 0 : i32
    return %c0_i32, %c0_i32_0 : i32, i32
  }
  func.func @transform_3(%arg0: i32) -> (i32, i32) {
    %c0_i32 = arith.constant 0 : i32
    %c0_i32_0 = arith.constant 0 : i32
    %c0_i32_1 = arith.constant 0 : i32
    return %c0_i32, %c0_i32_0 : i32, i32
  }
  func.func @transform_4(%arg0: i32) -> (i32, i32) {
    %c0_i32 = arith.constant 0 : i32
    %c0_i32_0 = arith.constant 0 : i32
    %c0_i32_1 = arith.constant 0 : i32
    return %c0_i32, %c0_i32_0 : i32, i32
  }
  func.func @transform_5(%arg0: i32) -> (i32, i32) {
    %c0_i32 = arith.constant 0 : i32
    %c0_i32_0 = arith.constant 0 : i32
    %c0_i32_1 = arith.constant 0 : i32
    return %c0_i32, %c0_i32_0 : i32, i32
  }
  func.func @transform_6(%arg0: i32) -> (i32, i32) {
    %c0_i32 = arith.constant 0 : i32
    %c0_i32_0 = arith.constant 0 : i32
    %c0_i32_1 = arith.constant 0 : i32
    return %c0_i32, %c0_i32_0 : i32, i32
  }
  func.func @transform_7(%arg0: i32) -> (i32, i32) {
    %c0_i32 = arith.constant 0 : i32
    %c0_i32_0 = arith.constant 0 : i32
    %c0_i32_1 = arith.constant 0 : i32
    return %c0_i32, %c0_i32_0 : i32, i32
  }
  func.func @transform_8(%arg0: i32) -> (i32, i32) {
    %c0_i32 = arith.constant 0 : i32
    %c0_i32_0 = arith.constant 0 : i32
    %c0_i32_1 = arith.constant 0 : i32
    return %c0_i32, %c0_i32_0 : i32, i32
  }
  func.func @transform_9(%arg0: i32) -> (i32, i32) {
    %c0_i32 = arith.constant 0 : i32
    %c0_i32_0 = arith.constant 0 : i32
    %c0_i32_1 = arith.constant 0 : i32
    return %c0_i32, %c0_i32_0 : i32, i32
  }
  func.func @transform_10(%arg0: i32) -> (i32, i32) {
    %c0_i32 = arith.constant 0 : i32
    %c0_i32_0 = arith.constant 0 : i32
    %c0_i32_1 = arith.constant 0 : i32
    return %c0_i32, %c0_i32_0 : i32, i32
  }
  func.func @transform_11(%arg0: i32) -> (i32, i32) {
    %c0_i32 = arith.constant 0 : i32
    %c0_i32_0 = arith.constant 0 : i32
    %c0_i32_1 = arith.constant 0 : i32
    return %c0_i32, %c0_i32_0 : i32, i32
  }
  func.func @transform_12(%arg0: i32) -> (i32, i32) {
    %c0_i32 = arith.constant 0 : i32
    %c0_i32_0 = arith.constant 0 : i32
    %c0_i32_1 = arith.constant 0 : i32
    return %c0_i32, %c0_i32_0 : i32, i32
  }
  func.func @transform_13(%arg0: i32) -> (i32, i32) {
    %c0_i32 = arith.constant 0 : i32
    %c0_i32_0 = arith.constant 0 : i32
    %c0_i32_1 = arith.constant 0 : i32
    return %c0_i32, %c0_i32_0 : i32, i32
  }
}

</mosaic_0001>

<llo_original>
// kernel: tpu_custom_call.1
$region0: #{tpu_custom_call.1}
  #allocation0 [shape = 'u32[]', space=smem, size = 0x4, offset = 0x4, fixed_abs, tag = 'smem constant byte address 0x4 - core index']
  #allocation1 [shape = 'u32[72,128]{1,0:T(1,128)}', space=vmem, size = 0x9000, scoped, tag = 'internal scratch']
  %s0 = inlined_call_operand.hbm [shape: f32[16,256], index: 0, kind: input, shape index: {}]
  %s1 = inlined_call_operand.hbm [shape: bf16[256,256], index: 1, kind: input, shape index: {}]
  %s2 = inlined_call_operand.hbm [shape: f32[1,256], index: 2, kind: input, shape index: {}]
  %s3 = inlined_call_operand.vmem [shape: f32[1,256], index: 3, kind: input, shape index: {}]
  %s4 = inlined_call_operand.hbm [shape: f32[1,256], index: 4, kind: input, shape index: {}]
  %s5 = inlined_call_operand.hbm [shape: bf16[256,256], index: 5, kind: input, shape index: {}]
  %s6 = inlined_call_operand.vmem [shape: f32[1,256], index: 6, kind: input, shape index: {}]
  %s7 = inlined_call_operand.vmem [shape: f32[1,256], index: 7, kind: input, shape index: {}]
  %s8 = inlined_call_operand.hbm [shape: f32[1,256], index: 8, kind: input, shape index: {}]
  %s9 = inlined_call_operand.hbm [shape: bf16[256,256], index: 9, kind: input, shape index: {}]
  %s10 = inlined_call_operand.vmem [shape: f32[1,256], index: 10, kind: input, shape index: {}]
  %s11 = inlined_call_operand.vmem [shape: f32[1,256], index: 11, kind: input, shape index: {}]
  %s12 = inlined_call_operand.hbm [shape: f32[1,256], index: 12, kind: input, shape index: {}]
  %s13 = inlined_call_operand.hbm [shape: f32[16,256], index: 13, kind: output, shape index: {}]
  %s14 = sld [smem:[#allocation0]]
  $region94: #{tpu_custom_call.1} parent=0
    _
  %s16 = ssub.s32 1, %s14
  %s17 = scalar_select 0, %s16, %s14
  $region1: #{tpu_custom_call.1} parent=0
    #allocation2 [shape = 'u8[16384]{0}', space=vmem, size = 0x4000, scoped, tag = 'input window, operand 0, single buffered']
    #allocation3 [shape = 's32[1]{0}', space=sflag, size = 0x4, scoped, tag = 'scoped memory for tpu_custom_call.1']
    #allocation4 [shape = 's32[1]{0}', space=sflag, size = 0x4, scoped, tag = 'scoped memory for tpu_custom_call.1']
    #allocation5 [shape = 'u8[131072]{0}', space=vmem, size = 0x20000, scoped, tag = 'input window, operand 1, single buffered']
    #allocation6 [shape = 's32[1]{0}', space=sflag, size = 0x4, scoped, tag = 'scoped memory for tpu_custom_call.1']
    #allocation7 [shape = 'u8[1024]{0}', space=vmem, size = 0x400, scoped, tag = 'input window, operand 2, single buffered']
    #allocation8 [shape = 'u8[1024]{0}', space=vmem, size = 0x400, scoped, tag = 'input window, operand 4, single buffered']
    #allocation9 [shape = 's32[1]{0}', space=sflag, size = 0x4, scoped, tag = 'scoped memory for tpu_custom_call.1']
    #allocation10 [shape = 'u8[131072]{0}', space=vmem, size = 0x20000, scoped, tag = 'input window, operand 5, single buffered']
    #allocation11 [shape = 'u8[1024]{0}', space=vmem, size = 0x400, scoped, tag = 'input window, operand 8, single buffered']
    #allocation12 [shape = 's32[1]{0}', space=sflag, size = 0x4, scoped, tag = 'scoped memory for tpu_custom_call.1']
    #allocation13 [shape = 'u8[131072]{0}', space=vmem, size = 0x20000, scoped, tag = 'input window, operand 9, single buffered']
    #allocation14 [shape = 'u8[1024]{0}', space=vmem, size = 0x400, scoped, tag = 'input window, operand 12, single buffered']
    #allocation15 [shape = 's32[1]{0}', space=sflag, size = 0x4, scoped, tag = 'scoped memory for tpu_custom_call.1']
    #allocation16 [shape = 'u8[16384]{0}', space=vmem, size = 0x4000, scoped, tag = 'output window, operand 0, single buffered']
    %18 = vsyncpa [#allocation3], 0
    %19 = vsyncpa [#allocation6], 0
    %20 = vsyncpa [#allocation9], 0
    %21 = vsyncpa [#allocation12], 0
    %22 = vsyncpa [#allocation15], 0
    %23 = vsyncpa [#allocation4], 0
    // Predicated region
    $region2: #{tpu_custom_call.1} parent=1 // pred_check
      _
    $region3: #{tpu_custom_call.1} parent=1 // pred_check_branch
      %25 = sbr.rel (0) target = $region5
    $region4: #{tpu_custom_call.1} parent=1 // pred_region
      %27 = vsyncadd [#allocation3], 0
      %s28 = sshll.u32 %s0, 4
      %s29 = int_to_ptr.hbm [resolvable:$true] %s28
      %s30 = sshll.u32 [#allocation2], 4
      %s31 = int_to_ptr.vmem [resolvable:$true] %s30
      %36 = dma.hbm_to_vmem [thread:$0]  %s29, 512, %s31, [#allocation3], 256, 256, 16
    $region5: #{tpu_custom_call.1} parent=1 // pred_fallthru
      _
    // Predicated region
    $region6: #{tpu_custom_call.1} parent=1 // pred_check
      _
    $region7: #{tpu_custom_call.1} parent=1 // pred_check_branch
      %38 = sbr.rel (0) target = $region9
    $region8: #{tpu_custom_call.1} parent=1 // pred_region
      %40 = vsyncadd [#allocation6], 0
      %s41 = sshll.u32 %s1, 4
      %s42 = int_to_ptr.hbm [resolvable:$true] %s41
      %s43 = sshll.u32 [#allocation5], 4
      %s44 = int_to_ptr.vmem [resolvable:$true] %s43
      %49 = dma.hbm_to_vmem [thread:$0]  %s42, 4096, %s44, [#allocation6], 128, 128, 8
    $region9: #{tpu_custom_call.1} parent=1 // pred_fallthru
      _
    // Predicated region
    $region10: #{tpu_custom_call.1} parent=1 // pred_check
      _
    $region11: #{tpu_custom_call.1} parent=1 // pred_check_branch
      %51 = sbr.rel (0) target = $region13
    $region12: #{tpu_custom_call.1} parent=1 // pred_region
      %53 = vsyncadd [#allocation6], 0
      %s55 = sshll.u32 %s2, 4
      %s56 = int_to_ptr.hbm [resolvable:$true] %s55
      %s57 = sshll.u32 [#allocation7], 4
      %s58 = int_to_ptr.vmem [resolvable:$true] %s57
      %60 = dma.hbm_to_vmem [thread:$0]  %s56, 32, %s58, [#allocation6]
    $region13: #{tpu_custom_call.1} parent=1 // pred_fallthru
      _
    // Predicated region
    $region14: #{tpu_custom_call.1} parent=1 // pred_check
      _
    $region15: #{tpu_custom_call.1} parent=1 // pred_check_branch
      %62 = sbr.rel (0) target = $region17
    $region16: #{tpu_custom_call.1} parent=1 // pred_region
      _
    $region17: #{tpu_custom_call.1} parent=1 // pred_fallthru
      _
    // Predicated region
    $region18: #{tpu_custom_call.1} parent=1 // pred_check
      _
    $region19: #{tpu_custom_call.1} parent=1 // pred_check_branch
      %64 = sbr.rel (0) target = $region21
    $region20: #{tpu_custom_call.1} parent=1 // pred_region
      %66 = vsyncadd [#allocation9], 0
      %s68 = sshll.u32 %s4, 4
      %s69 = int_to_ptr.hbm [resolvable:$true] %s68
      %s70 = sshll.u32 [#allocation8], 4
      %s71 = int_to_ptr.vmem [resolvable:$true] %s70
      %73 = dma.hbm_to_vmem [thread:$0]  %s69, 32, %s71, [#allocation9]
    $region21: #{tpu_custom_call.1} parent=1 // pred_fallthru
      _
    // Predicated region
    $region22: #{tpu_custom_call.1} parent=1 // pred_check
      _
    $region23: #{tpu_custom_call.1} parent=1 // pred_check_branch
      %75 = sbr.rel (0) target = $region25
    $region24: #{tpu_custom_call.1} parent=1 // pred_region
      %77 = vsyncadd [#allocation9], 0
      %s78 = sshll.u32 %s5, 4
      %s79 = int_to_ptr.hbm [resolvable:$true] %s78
      %s80 = sshll.u32 [#allocation10], 4
      %s81 = int_to_ptr.vmem [resolvable:$true] %s80
      %86 = dma.hbm_to_vmem [thread:$0]  %s79, 4096, %s81, [#allocation9], 128, 128, 8
    $region25: #{tpu_custom_call.1} parent=1 // pred_fallthru
      _
    // Predicated region
    $region26: #{tpu_custom_call.1} parent=1 // pred_check
      _
    $region27: #{tpu_custom_call.1} parent=1 // pred_check_branch
      %88 = sbr.rel (0) target = $region29
    $region28: #{tpu_custom_call.1} parent=1 // pred_region
      _
    $region29: #{tpu_custom_call.1} parent=1 // pred_fallthru
      _
    // Predicated region
    $region30: #{tpu_custom_call.1} parent=1 // pred_check
      _
    $region31: #{tpu_custom_call.1} parent=1 // pred_check_branch
      %90 = sbr.rel (0) target = $region33
    $region32: #{tpu_custom_call.1} parent=1 // pred_region
      _
    $region33: #{tpu_custom_call.1} parent=1 // pred_fallthru
      _
    // Predicated region
    $region34: #{tpu_custom_call.1} parent=1 // pred_check
      _
    $region35: #{tpu_custom_call.1} parent=1 // pred_check_branch
      %92 = sbr.rel (0) target = $region37
    $region36: #{tpu_custom_call.1} parent=1 // pred_region
      %94 = vsyncadd [#allocation12], 0
      %s96 = sshll.u32 %s8, 4
      %s97 = int_to_ptr.hbm [resolvable:$true] %s96
      %s98 = sshll.u32 [#allocation11], 4
      %s99 = int_to_ptr.vmem [resolvable:$true] %s98
      %101 = dma.hbm_to_vmem [thread:$0]  %s97, 32, %s99, [#allocation12]
    $region37: #{tpu_custom_call.1} parent=1 // pred_fallthru
      _
    // Predicated region
    $region38: #{tpu_custom_call.1} parent=1 // pred_check
      _
    $region39: #{tpu_custom_call.1} parent=1 // pred_check_branch
      %103 = sbr.rel (0) target = $region41
    $region40: #{tpu_custom_call.1} parent=1 // pred_region
      %105 = vsyncadd [#allocation12], 0
      %s106 = sshll.u32 %s9, 4
      %s107 = int_to_ptr.hbm [resolvable:$true] %s106
      %s108 = sshll.u32 [#allocation13], 4
      %s109 = int_to_ptr.vmem [resolvable:$true] %s108
      %114 = dma.hbm_to_vmem [thread:$0]  %s107, 4096, %s109, [#allocation12], 128, 128, 8
    $region41: #{tpu_custom_call.1} parent=1 // pred_fallthru
      _
    // Predicated region
    $region42: #{tpu_custom_call.1} parent=1 // pred_check
      _
    $region43: #{tpu_custom_call.1} parent=1 // pred_check_branch
      %116 = sbr.rel (0) target = $region45
    $region44: #{tpu_custom_call.1} parent=1 // pred_region
      _
    $region45: #{tpu_custom_call.1} parent=1 // pred_fallthru
      _
    // Predicated region
    $region46: #{tpu_custom_call.1} parent=1 // pred_check
      _
    $region47: #{tpu_custom_call.1} parent=1 // pred_check_branch
      %118 = sbr.rel (0) target = $region49
    $region48: #{tpu_custom_call.1} parent=1 // pred_region
      _
    $region49: #{tpu_custom_call.1} parent=1 // pred_fallthru
      _
    // Predicated region
    $region50: #{tpu_custom_call.1} parent=1 // pred_check
      _
    $region51: #{tpu_custom_call.1} parent=1 // pred_check_branch
      %120 = sbr.rel (0) target = $region53
    $region52: #{tpu_custom_call.1} parent=1 // pred_region
      %122 = vsyncadd [#allocation15], 0
      %s124 = sshll.u32 %s12, 4
      %s125 = int_to_ptr.hbm [resolvable:$true] %s124
      %s126 = sshll.u32 [#allocation14], 4
      %s127 = int_to_ptr.vmem [resolvable:$true] %s126
      %129 = dma.hbm_to_vmem [thread:$0]  %s125, 32, %s127, [#allocation15]
    $region53: #{tpu_custom_call.1} parent=1 // pred_fallthru
      _
    // Predicated region
    $region54: #{tpu_custom_call.1} parent=1 // pred_check
      _
    $region55: #{tpu_custom_call.1} parent=1 // pred_check_branch
      %131 = sbr.rel (0) target = $region57
    $region56: #{tpu_custom_call.1} parent=1 // pred_region
      %133 = dma.done [#allocation3], 512
    $region57: #{tpu_custom_call.1} parent=1 // pred_fallthru
      _
    // Predicated region
    $region58: #{tpu_custom_call.1} parent=1 // pred_check
      _
    $region59: #{tpu_custom_call.1} parent=1 // pred_check_branch
      %135 = sbr.rel (0) target = $region61
    $region60: #{tpu_custom_call.1} parent=1 // pred_region
      %137 = dma.done [#allocation6], 4096
    $region61: #{tpu_custom_call.1} parent=1 // pred_fallthru
      _
    // Predicated region
    $region62: #{tpu_custom_call.1} parent=1 // pred_check
      _
    $region63: #{tpu_custom_call.1} parent=1 // pred_check_branch
      %139 = sbr.rel (0) target = $region65
    $region64: #{tpu_custom_call.1} parent=1 // pred_region
      %141 = dma.done [#allocation6], 32
    $region65: #{tpu_custom_call.1} parent=1 // pred_fallthru
      _
    // Predicated region
    $region66: #{tpu_custom_call.1} parent=1 // pred_check
      _
    $region67: #{tpu_custom_call.1} parent=1 // pred_check_branch
      %143 = sbr.rel (0) target = $region69
    $region68: #{tpu_custom_call.1} parent=1 // pred_region
      %145 = dma.done [#allocation9], 32
    $region69: #{tpu_custom_call.1} parent=1 // pred_fallthru
      _
    // Predicated region
    $region70: #{tpu_custom_call.1} parent=1 // pred_check
      _
    $region71: #{tpu_custom_call.1} parent=1 // pred_check_branch
      %147 = sbr.rel (0) target = $region73
    $region72: #{tpu_custom_call.1} parent=1 // pred_region
      %149 = dma.done [#allocation9], 4096
    $region73: #{tpu_custom_call.1} parent=1 // pred_fallthru
      _
    // Predicated region
    $region74: #{tpu_custom_call.1} parent=1 // pred_check
      _
    $region75: #{tpu_custom_call.1} parent=1 // pred_check_branch
      %151 = sbr.rel (0) target = $region77
    $region76: #{tpu_custom_call.1} parent=1 // pred_region
      %153 = dma.done [#allocation12], 32
    $region77: #{tpu_custom_call.1} parent=1 // pred_fallthru
      _
    // Predicated region
    $region78: #{tpu_custom_call.1} parent=1 // pred_check
      _
    $region79: #{tpu_custom_call.1} parent=1 // pred_check_branch
      %155 = sbr.rel (0) target = $region81
    $region80: #{tpu_custom_call.1} parent=1 // pred_region
      %157 = dma.done [#allocation12], 4096
    $region81: #{tpu_custom_call.1} parent=1 // pred_fallthru
      _
    // Predicated region
    $region82: #{tpu_custom_call.1} parent=1 // pred_check
      _
    $region83: #{tpu_custom_call.1} parent=1 // pred_check_branch
      %159 = sbr.rel (0) target = $region85
    $region84: #{tpu_custom_call.1} parent=1 // pred_region
      %161 = dma.done [#allocation15], 32
    $region85: #{tpu_custom_call.1} parent=1 // pred_fallthru
      _
    %v162 = vld [vmem:[#allocation2] sm:$0xff]
    %v163 = vld [vmem:[#allocation2 + $0x8] sm:$0xff]
    %v164 = vld [vmem:[#allocation2 + $0x10] sm:$0xff]
    %v165 = vld [vmem:[#allocation2 + $0x18] sm:$0xff]
    %v166 = vpack.c.bf16 %v164, %v162
    %v167 = vpack.c.bf16 %v165, %v163
    %v168 = vld [vmem:[#allocation5] sm:$0xff]
    %v169 = vld [vmem:[#allocation5 + $0x8] sm:$0xff]
    %v170 = vld [vmem:[#allocation5 + $0x10] sm:$0xff]
    %v171 = vld [vmem:[#allocation5 + $0x18] sm:$0xff]
    %v172 = vld [vmem:[#allocation5 + $0x20] sm:$0xff]
    %v173 = vld [vmem:[#allocation5 + $0x28] sm:$0xff]
    %v174 = vld [vmem:[#allocation5 + $0x30] sm:$0xff]
    %v175 = vld [vmem:[#allocation5 + $0x38] sm:$0xff]
    %v176 = vld [vmem:[#allocation5 + $0x40] sm:$0xff]
    %v177 = vld [vmem:[#allocation5 + $0x48] sm:$0xff]
    %v178 = vld [vmem:[#allocation5 + $0x50] sm:$0xff]
    %v179 = vld [vmem:[#allocation5 + $0x58] sm:$0xff]
    %v180 = vld [vmem:[#allocation5 + $0x60] sm:$0xff]
    %v181 = vld [vmem:[#allocation5 + $0x68] sm:$0xff]
    %v182 = vld [vmem:[#allocation5 + $0x70] sm:$0xff]
    %v183 = vld [vmem:[#allocation5 + $0x78] sm:$0xff]
    %v184 = vld [vmem:[#allocation5 + $0x80] sm:$0xff]
    %v185 = vld [vmem:[#allocation5 + $0x88] sm:$0xff]
    %v186 = vld [vmem:[#allocation5 + $0x90] sm:$0xff]
    %v187 = vld [vmem:[#allocation5 + $0x98] sm:$0xff]
    %v188 = vld [vmem:[#allocation5 + $0xa0] sm:$0xff]
    %v189 = vld [vmem:[#allocation5 + $0xa8] sm:$0xff]
    %v190 = vld [vmem:[#allocation5 + $0xb0] sm:$0xff]
    %v191 = vld [vmem:[#allocation5 + $0xb8] sm:$0xff]
    %v192 = vld [vmem:[#allocation5 + $0xc0] sm:$0xff]
    %v193 = vld [vmem:[#allocation5 + $0xc8] sm:$0xff]
    %v194 = vld [vmem:[#allocation5 + $0xd0] sm:$0xff]
    %v195 = vld [vmem:[#allocation5 + $0xd8] sm:$0xff]
    %v196 = vld [vmem:[#allocation5 + $0xe0] sm:$0xff]
    %v197 = vld [vmem:[#allocation5 + $0xe8] sm:$0xff]
    %v198 = vld [vmem:[#allocation5 + $0xf0] sm:$0xff]
    %v199 = vld [vmem:[#allocation5 + $0xf8] sm:$0xff]
    %v200 = vld [vmem:[#allocation7] sm:$0x3]
    %v202 = vperm.slane %v200, 0
    %v203 = vperm.slane %v200, 1
    %v238 = vunpack.c.l.b16 %v168
    %v239 = vunpack.c.h.b16 %v168
    %v240 = vunpack.c.l.b16 %v169
    %v241 = vunpack.c.h.b16 %v169
    %v242 = vunpack.c.l.b16 %v170
    %v243 = vunpack.c.h.b16 %v170
    %v244 = vunpack.c.l.b16 %v171
    %v245 = vunpack.c.h.b16 %v171
    %v246 = vunpack.c.l.b16 %v172
    %v247 = vunpack.c.h.b16 %v172
    %v248 = vunpack.c.l.b16 %v173
    %v249 = vunpack.c.h.b16 %v173
    %v250 = vunpack.c.l.b16 %v174
    %v251 = vunpack.c.h.b16 %v174
    %v252 = vunpack.c.l.b16 %v175
    %v253 = vunpack.c.h.b16 %v175
    %v254 = vunpack.c.l.b16 %v176
    %v255 = vunpack.c.h.b16 %v176
    %v256 = vunpack.c.l.b16 %v177
    %v257 = vunpack.c.h.b16 %v177
    %v258 = vunpack.c.l.b16 %v178
    %v259 = vunpack.c.h.b16 %v178
    %v260 = vunpack.c.l.b16 %v179
    %v261 = vunpack.c.h.b16 %v179
    %v262 = vunpack.c.l.b16 %v180
    %v263 = vunpack.c.h.b16 %v180
    %v264 = vunpack.c.l.b16 %v181
    %v265 = vunpack.c.h.b16 %v181
    %v266 = vunpack.c.l.b16 %v182
    %v267 = vunpack.c.h.b16 %v182
    %v268 = vunpack.c.l.b16 %v183
    %v269 = vunpack.c.h.b16 %v183
    %v270 = vunpack.c.l.b16 %v184
    %v271 = vunpack.c.h.b16 %v184
    %v272 = vunpack.c.l.b16 %v185
    %v273 = vunpack.c.h.b16 %v185
    %v274 = vunpack.c.l.b16 %v186
    %v275 = vunpack.c.h.b16 %v186
    %v276 = vunpack.c.l.b16 %v187
    %v277 = vunpack.c.h.b16 %v187
    %v278 = vunpack.c.l.b16 %v188
    %v279 = vunpack.c.h.b16 %v188
    %v280 = vunpack.c.l.b16 %v189
    %v281 = vunpack.c.h.b16 %v189
    %v282 = vunpack.c.l.b16 %v190
    %v283 = vunpack.c.h.b16 %v190
    %v284 = vunpack.c.l.b16 %v191
    %v285 = vunpack.c.h.b16 %v191
    %v286 = vunpack.c.l.b16 %v192
    %v287 = vunpack.c.h.b16 %v192
    %v288 = vunpack.c.l.b16 %v193
    %v289 = vunpack.c.h.b16 %v193
    %v290 = vunpack.c.l.b16 %v194
    %v291 = vunpack.c.h.b16 %v194
    %v292 = vunpack.c.l.b16 %v195
    %v293 = vunpack.c.h.b16 %v195
    %v294 = vunpack.c.l.b16 %v196
    %v295 = vunpack.c.h.b16 %v196
    %v296 = vunpack.c.l.b16 %v197
    %v297 = vunpack.c.h.b16 %v197
    %v298 = vunpack.c.l.b16 %v198
    %v299 = vunpack.c.h.b16 %v198
    %v300 = vunpack.c.l.b16 %v199
    %v301 = vunpack.c.h.b16 %v199
    %v302 = vpack.c.b16 %v240, %v238
    %v303 = vpack.c.b16 %v241, %v239
    %v304 = vpack.c.b16 %v244, %v242
    %v305 = vpack.c.b16 %v245, %v243
    %v306 = vpack.c.b16 %v248, %v246
    %v307 = vpack.c.b16 %v249, %v247
    %v308 = vpack.c.b16 %v252, %v250
    %v309 = vpack.c.b16 %v253, %v251
    %v310 = vpack.c.b16 %v256, %v254
    %v311 = vpack.c.b16 %v257, %v255
    %v312 = vpack.c.b16 %v260, %v258
    %v313 = vpack.c.b16 %v261, %v259
    %v314 = vpack.c.b16 %v264, %v262
    %v315 = vpack.c.b16 %v265, %v263
    %v316 = vpack.c.b16 %v268, %v266
    %v317 = vpack.c.b16 %v269, %v267
    %v318 = vpack.c.b16 %v272, %v270
    %v319 = vpack.c.b16 %v273, %v271
    %v320 = vpack.c.b16 %v276, %v274
    %v321 = vpack.c.b16 %v277, %v275
    %v322 = vpack.c.b16 %v280, %v278
    %v323 = vpack.c.b16 %v281, %v279
    %v324 = vpack.c.b16 %v284, %v282
    %v325 = vpack.c.b16 %v285, %v283
    %v326 = vpack.c.b16 %v288, %v286
    %v327 = vpack.c.b16 %v289, %v287
    %v328 = vpack.c.b16 %v292, %v290
    %v329 = vpack.c.b16 %v293, %v291
    %v330 = vpack.c.b16 %v296, %v294
    %v331 = vpack.c.b16 %v297, %v295
    %v332 = vpack.c.b16 %v300, %v298
    %v333 = vpack.c.b16 %v301, %v299
    %366 = vmatpush.bf16.msra.mxu0 %v316
    %367 = vmatpush.bf16.msra.mxu0 %v314
    %368 = vmatpush.bf16.msra.mxu0 %v312
    %369 = vmatpush.bf16.msra.mxu0 %v310
    %370 = vmatpush.bf16.msra.mxu0 %v308
    %371 = vmatpush.bf16.msra.mxu0 %v306
    %372 = vmatpush.bf16.msra.mxu0 %v304
    %373 = vmatpush.bf16.msra.mxu0 %v302
    %374 = vmatmul.bf16.gmra.mxu0 %v166
    %v375 = vpop.f32.mrf.mxu0
    %v376 = vadd.f32 %v202, %v375
    %v377 = vpop.f32.mrf.mxu0
    %v378 = vadd.f32 %v202, %v377
    %379 = vdwg.mxu0
    %380 = vmatpush.bf16.msra.mxu0 %v332
    %381 = vmatpush.bf16.msra.mxu0 %v330
    %382 = vmatpush.bf16.msra.mxu0 %v328
    %383 = vmatpush.bf16.msra.mxu0 %v326
    %384 = vmatpush.bf16.msra.mxu0 %v324
    %385 = vmatpush.bf16.msra.mxu0 %v322
    %386 = vmatpush.bf16.msra.mxu0 %v320
    %387 = vmatpush.bf16.msra.mxu0 %v318
    %388 = vmatmul.bf16.gmra.mxu0 %v167
    %v389 = vpop.f32.mrf.mxu0
    %v390 = vadd.f32 %v376, %v389
    %v391 = vpop.f32.mrf.mxu0
    %v392 = vadd.f32 %v378, %v391
    %393 = vdwg.mxu0
    %394 = vmatpush.bf16.msra.mxu0 %v317
    %395 = vmatpush.bf16.msra.mxu0 %v315
    %396 = vmatpush.bf16.msra.mxu0 %v313
    %397 = vmatpush.bf16.msra.mxu0 %v311
    %398 = vmatpush.bf16.msra.mxu0 %v309
    %399 = vmatpush.bf16.msra.mxu0 %v307
    %400 = vmatpush.bf16.msra.mxu0 %v305
    %401 = vmatpush.bf16.msra.mxu0 %v303
    %402 = vmatmul.bf16.gmra.mxu0 %v166
    %v403 = vpop.f32.mrf.mxu0
    %v404 = vadd.f32 %v203, %v403
    %v405 = vpop.f32.mrf.mxu0
    %v406 = vadd.f32 %v203, %v405
    %407 = vdwg.mxu0
    %408 = vmatpush.bf16.msra.mxu0 %v333
    %409 = vmatpush.bf16.msra.mxu0 %v331
    %410 = vmatpush.bf16.msra.mxu0 %v329
    %411 = vmatpush.bf16.msra.mxu0 %v327
    %412 = vmatpush.bf16.msra.mxu0 %v325
    %413 = vmatpush.bf16.msra.mxu0 %v323
    %414 = vmatpush.bf16.msra.mxu0 %v321
    %415 = vmatpush.bf16.msra.mxu0 %v319
    %416 = vmatmul.bf16.gmra.mxu0 %v167
    %v417 = vpop.f32.mrf.mxu0
    %v418 = vadd.f32 %v404, %v417
    %v419 = vpop.f32.mrf.mxu0
    %v420 = vadd.f32 %v406, %v419
    %421 = vdwg.mxu0
    %v422 = vld [vmem:[%s3] sm:$0x3]
    %v423 = vld [vmem:[#allocation8] sm:$0x3]
    %v424 = vadd.f32 %v390, %v418
    %425 = vadd.xlane.f32.xlu0 %v424
    %v426 = vpop.xlane.xlu0 %425
    %v427 = vadd.f32 %v392, %v420
    %428 = vadd.xlane.f32.xlu0 %v427
    %v429 = vpop.xlane.xlu0 %428
    %v430 = vrcp.pop 256.0
    %v431 = vmul.f32 256.0, %v430
    %v432 = vsub.f32 1.0, %v431
    %v433 = vmul.f32 %v430, %v432
    %v434 = vadd.f32 %v430, %v433
    %vm435 = vweird.f32 %v430
    %v436 = vsel %vm435, %v430, %v434
    %v437 = vmul.f32 %v426, %v436
    %v438 = vmul.f32 %v429, %v436
    %v439 = vsub.f32 %v390, %v437
    %v440 = vsub.f32 %v418, %v437
    %v441 = vsub.f32 %v392, %v438
    %v442 = vsub.f32 %v420, %v438
    %v443 = vmul.f32 %v439, %v439
    %v444 = vmul.f32 %v440, %v440
    %v445 = vmul.f32 %v441, %v441
    %v446 = vmul.f32 %v442, %v442
    %v447 = vadd.f32 %v443, %v444
    %448 = vadd.xlane.f32.xlu0 %v447
    %v449 = vpop.xlane.xlu0 %448
    %v450 = vadd.f32 %v445, %v446
    %451 = vadd.xlane.f32.xlu0 %v450
    %v452 = vpop.xlane.xlu0 %451
    %v453 = vmul.f32 %v449, %v436
    %v454 = vmul.f32 %v452, %v436
    %v455 = vadd.f32 %v453, 1e-05
    %v456 = vadd.f32 %v454, 1e-05
    %v457 = vrsqrt.pop %v455
    %v458 = vmul.f32 %v457, %v455
    %v459 = vmul.f32 %v458, %v457
    %v460 = vmul.f32 0.5, %v459
    %v461 = vsub.f32 1.5, %v460
    %v462 = vmul.f32 %v457, %v461
    %vm463 = vweird.f32 %v455
    %vm464 = vweird.f32 %v457
    %vm465 = vmor %vm463, %vm464
    %v466 = vsel %vm465, %v457, %v462
    %v467 = vrsqrt.pop %v456
    %v468 = vmul.f32 %v467, %v456
    %v469 = vmul.f32 %v468, %v467
    %v470 = vmul.f32 0.5, %v469
    %v471 = vsub.f32 1.5, %v470
    %v472 = vmul.f32 %v467, %v471
    %vm473 = vweird.f32 %v456
    %vm474 = vweird.f32 %v467
    %vm475 = vmor %vm473, %vm474
    %v476 = vsel %vm475, %v467, %v472
    %v477 = vmul.f32 %v439, %v466
    %v478 = vmul.f32 %v440, %v466
    %v479 = vmul.f32 %v441, %v476
    %v480 = vmul.f32 %v442, %v476
    %v482 = vperm.slane %v422, 0
    %v483 = vperm.slane %v422, 1
    %v486 = vmul.f32 %v477, %v482
    %v487 = vmul.f32 %v478, %v483
    %v488 = vmul.f32 %v479, %v482
    %v489 = vmul.f32 %v480, %v483
    %v491 = vperm.slane %v423, 0
    %v492 = vperm.slane %v423, 1
    %v495 = vadd.f32 %v486, %v491
    %v496 = vadd.f32 %v487, %v492
    %v497 = vadd.f32 %v488, %v491
    %v498 = vadd.f32 %v489, %v492
    %v499 = vmax.f32 %v495, 0.0
    %v500 = vmax.f32 %v496, 0.0
    %v501 = vmax.f32 %v497, 0.0
    %v502 = vmax.f32 %v498, 0.0
    %v503 = vpack.c.bf16 %v501, %v499
    %v504 = vpack.c.bf16 %v502, %v500
    %v505 = vld [vmem:[#allocation10] sm:$0xff]
    %v506 = vld [vmem:[#allocation10 + $0x8] sm:$0xff]
    %v507 = vld [vmem:[#allocation10 + $0x10] sm:$0xff]
    %v508 = vld [vmem:[#allocation10 + $0x18] sm:$0xff]
    %v509 = vld [vmem:[#allocation10 + $0x20] sm:$0xff]
    %v510 = vld [vmem:[#allocation10 + $0x28] sm:$0xff]
    %v511 = vld [vmem:[#allocation10 + $0x30] sm:$0xff]
    %v512 = vld [vmem:[#allocation10 + $0x38] sm:$0xff]
    %v513 = vld [vmem:[#allocation10 + $0x40] sm:$0xff]
    %v514 = vld [vmem:[#allocation10 + $0x48] sm:$0xff]
    %v515 = vld [vmem:[#allocation10 + $0x50] sm:$0xff]
    %v516 = vld [vmem:[#allocation10 + $0x58] sm:$0xff]
    %v517 = vld [vmem:[#allocation10 + $0x60] sm:$0xff]
    %v518 = vld [vmem:[#allocation10 + $0x68] sm:$0xff]
    %v519 = vld [vmem:[#allocation10 + $0x70] sm:$0xff]
    %v520 = vld [vmem:[#allocation10 + $0x78] sm:$0xff]
    %v521 = vld [vmem:[#allocation10 + $0x80] sm:$0xff]
    %v522 = vld [vmem:[#allocation10 + $0x88] sm:$0xff]
    %v523 = vld [vmem:[#allocation10 + $0x90] sm:$0xff]
    %v524 = vld [vmem:[#allocation10 + $0x98] sm:$0xff]
    %v525 = vld [vmem:[#allocation10 + $0xa0] sm:$0xff]
    %v526 = vld [vmem:[#allocation10 + $0xa8] sm:$0xff]
    %v527 = vld [vmem:[#allocation10 + $0xb0] sm:$0xff]
    %v528 = vld [vmem:[#allocation10 + $0xb8] sm:$0xff]
    %v529 = vld [vmem:[#allocation10 + $0xc0] sm:$0xff]
    %v530 = vld [vmem:[#allocation10 + $0xc8] sm:$0xff]
    %v531 = vld [vmem:[#allocation10 + $0xd0] sm:$0xff]
    %v532 = vld [vmem:[#allocation10 + $0xd8] sm:$0xff]
    %v533 = vld [vmem:[#allocation10 + $0xe0] sm:$0xff]
    %v534 = vld [vmem:[#allocation10 + $0xe8] sm:$0xff]
    %v535 = vld [vmem:[#allocation10 + $0xf0] sm:$0xff]
    %v536 = vld [vmem:[#allocation10 + $0xf8] sm:$0xff]
    %v537 = vld [vmem:[%s6] sm:$0x3]
    %v539 = vperm.slane %v537, 0
    %v540 = vperm.slane %v537, 1
    %v575 = vunpack.c.l.b16 %v505
    %v576 = vunpack.c.h.b16 %v505
    %v577 = vunpack.c.l.b16 %v506
    %v578 = vunpack.c.h.b16 %v506
    %v579 = vunpack.c.l.b16 %v507
    %v580 = vunpack.c.h.b16 %v507
    %v581 = vunpack.c.l.b16 %v508
    %v582 = vunpack.c.h.b16 %v508
    %v583 = vunpack.c.l.b16 %v509
    %v584 = vunpack.c.h.b16 %v509
    %v585 = vunpack.c.l.b16 %v510
    %v586 = vunpack.c.h.b16 %v510
    %v587 = vunpack.c.l.b16 %v511
    %v588 = vunpack.c.h.b16 %v511
    %v589 = vunpack.c.l.b16 %v512
    %v590 = vunpack.c.h.b16 %v512
    %v591 = vunpack.c.l.b16 %v513
    %v592 = vunpack.c.h.b16 %v513
    %v593 = vunpack.c.l.b16 %v514
    %v594 = vunpack.c.h.b16 %v514
    %v595 = vunpack.c.l.b16 %v515
    %v596 = vunpack.c.h.b16 %v515
    %v597 = vunpack.c.l.b16 %v516
    %v598 = vunpack.c.h.b16 %v516
    %v599 = vunpack.c.l.b16 %v517
    %v600 = vunpack.c.h.b16 %v517
    %v601 = vunpack.c.l.b16 %v518
    %v602 = vunpack.c.h.b16 %v518
    %v603 = vunpack.c.l.b16 %v519
    %v604 = vunpack.c.h.b16 %v519
    %v605 = vunpack.c.l.b16 %v520
    %v606 = vunpack.c.h.b16 %v520
    %v607 = vunpack.c.l.b16 %v521
    %v608 = vunpack.c.h.b16 %v521
    %v609 = vunpack.c.l.b16 %v522
    %v610 = vunpack.c.h.b16 %v522
    %v611 = vunpack.c.l.b16 %v523
    %v612 = vunpack.c.h.b16 %v523
    %v613 = vunpack.c.l.b16 %v524
    %v614 = vunpack.c.h.b16 %v524
    %v615 = vunpack.c.l.b16 %v525
    %v616 = vunpack.c.h.b16 %v525
    %v617 = vunpack.c.l.b16 %v526
    %v618 = vunpack.c.h.b16 %v526
    %v619 = vunpack.c.l.b16 %v527
    %v620 = vunpack.c.h.b16 %v527
    %v621 = vunpack.c.l.b16 %v528
    %v622 = vunpack.c.h.b16 %v528
    %v623 = vunpack.c.l.b16 %v529
    %v624 = vunpack.c.h.b16 %v529
    %v625 = vunpack.c.l.b16 %v530
    %v626 = vunpack.c.h.b16 %v530
    %v627 = vunpack.c.l.b16 %v531
    %v628 = vunpack.c.h.b16 %v531
    %v629 = vunpack.c.l.b16 %v532
    %v630 = vunpack.c.h.b16 %v532
    %v631 = vunpack.c.l.b16 %v533
    %v632 = vunpack.c.h.b16 %v533
    %v633 = vunpack.c.l.b16 %v534
    %v634 = vunpack.c.h.b16 %v534
    %v635 = vunpack.c.l.b16 %v535
    %v636 = vunpack.c.h.b16 %v535
    %v637 = vunpack.c.l.b16 %v536
    %v638 = vunpack.c.h.b16 %v536
    %v639 = vpack.c.b16 %v577, %v575
    %v640 = vpack.c.b16 %v578, %v576
    %v641 = vpack.c.b16 %v581, %v579
    %v642 = vpack.c.b16 %v582, %v580
    %v643 = vpack.c.b16 %v585, %v583
    %v644 = vpack.c.b16 %v586, %v584
    %v645 = vpack.c.b16 %v589, %v587
    %v646 = vpack.c.b16 %v590, %v588
    %v647 = vpack.c.b16 %v593, %v591
    %v648 = vpack.c.b16 %v594, %v592
    %v649 = vpack.c.b16 %v597, %v595
    %v650 = vpack.c.b16 %v598, %v596
    %v651 = vpack.c.b16 %v601, %v599
    %v652 = vpack.c.b16 %v602, %v600
    %v653 = vpack.c.b16 %v605, %v603
    %v654 = vpack.c.b16 %v606, %v604
    %v655 = vpack.c.b16 %v609, %v607
    %v656 = vpack.c.b16 %v610, %v608
    %v657 = vpack.c.b16 %v613, %v611
    %v658 = vpack.c.b16 %v614, %v612
    %v659 = vpack.c.b16 %v617, %v615
    %v660 = vpack.c.b16 %v618, %v616
    %v661 = vpack.c.b16 %v621, %v619
    %v662 = vpack.c.b16 %v622, %v620
    %v663 = vpack.c.b16 %v625, %v623
    %v664 = vpack.c.b16 %v626, %v624
    %v665 = vpack.c.b16 %v629, %v627
    %v666 = vpack.c.b16 %v630, %v628
    %v667 = vpack.c.b16 %v633, %v631
    %v668 = vpack.c.b16 %v634, %v632
    %v669 = vpack.c.b16 %v637, %v635
    %v670 = vpack.c.b16 %v638, %v636
    %703 = vmatpush.bf16.msra.mxu0 %v653
    %704 = vmatpush.bf16.msra.mxu0 %v651
    %705 = vmatpush.bf16.msra.mxu0 %v649
    %706 = vmatpush.bf16.msra.mxu0 %v647
    %707 = vmatpush.bf16.msra.mxu0 %v645
    %708 = vmatpush.bf16.msra.mxu0 %v643
    %709 = vmatpush.bf16.msra.mxu0 %v641
    %710 = vmatpush.bf16.msra.mxu0 %v639
    %711 = vmatmul.bf16.gmra.mxu0 %v503
    %v712 = vpop.f32.mrf.mxu0
    %v713 = vadd.f32 %v539, %v712
    %v714 = vpop.f32.mrf.mxu0
    %v715 = vadd.f32 %v539, %v714
    %716 = vdwg.mxu0
    %717 = vmatpush.bf16.msra.mxu0 %v669
    %718 = vmatpush.bf16.msra.mxu0 %v667
    %719 = vmatpush.bf16.msra.mxu0 %v665
    %720 = vmatpush.bf16.msra.mxu0 %v663
    %721 = vmatpush.bf16.msra.mxu0 %v661
    %722 = vmatpush.bf16.msra.mxu0 %v659
    %723 = vmatpush.bf16.msra.mxu0 %v657
    %724 = vmatpush.bf16.msra.mxu0 %v655
    %725 = vmatmul.bf16.gmra.mxu0 %v504
    %v726 = vpop.f32.mrf.mxu0
    %v727 = vadd.f32 %v713, %v726
    %v728 = vpop.f32.mrf.mxu0
    %v729 = vadd.f32 %v715, %v728
    %730 = vdwg.mxu0
    %731 = vmatpush.bf16.msra.mxu0 %v654
    %732 = vmatpush.bf16.msra.mxu0 %v652
    %733 = vmatpush.bf16.msra.mxu0 %v650
    %734 = vmatpush.bf16.msra.mxu0 %v648
    %735 = vmatpush.bf16.msra.mxu0 %v646
    %736 = vmatpush.bf16.msra.mxu0 %v644
    %737 = vmatpush.bf16.msra.mxu0 %v642
    %738 = vmatpush.bf16.msra.mxu0 %v640
    %739 = vmatmul.bf16.gmra.mxu0 %v503
    %v740 = vpop.f32.mrf.mxu0
    %v741 = vadd.f32 %v540, %v740
    %v742 = vpop.f32.mrf.mxu0
    %v743 = vadd.f32 %v540, %v742
    %744 = vdwg.mxu0
    %745 = vmatpush.bf16.msra.mxu0 %v670
    %746 = vmatpush.bf16.msra.mxu0 %v668
    %747 = vmatpush.bf16.msra.mxu0 %v666
    %748 = vmatpush.bf16.msra.mxu0 %v664
    %749 = vmatpush.bf16.msra.mxu0 %v662
    %750 = vmatpush.bf16.msra.mxu0 %v660
    %751 = vmatpush.bf16.msra.mxu0 %v658
    %752 = vmatpush.bf16.msra.mxu0 %v656
    %753 = vmatmul.bf16.gmra.mxu0 %v504
    %v754 = vpop.f32.mrf.mxu0
    %v755 = vadd.f32 %v741, %v754
    %v756 = vpop.f32.mrf.mxu0
    %v757 = vadd.f32 %v743, %v756
    %758 = vdwg.mxu0
    %v759 = vld [vmem:[%s7] sm:$0x3]
    %v760 = vld [vmem:[#allocation11] sm:$0x3]
    %v761 = vadd.f32 %v727, %v755
    %762 = vadd.xlane.f32.xlu0 %v761
    %v763 = vpop.xlane.xlu0 %762
    %v764 = vadd.f32 %v729, %v757
    %765 = vadd.xlane.f32.xlu0 %v764
    %v766 = vpop.xlane.xlu0 %765
    %v767 = vmul.f32 %v763, %v436
    %v768 = vmul.f32 %v766, %v436
    %v769 = vsub.f32 %v727, %v767
    %v770 = vsub.f32 %v755, %v767
    %v771 = vsub.f32 %v729, %v768
    %v772 = vsub.f32 %v757, %v768
    %v773 = vmul.f32 %v769, %v769
    %v774 = vmul.f32 %v770, %v770
    %v775 = vmul.f32 %v771, %v771
    %v776 = vmul.f32 %v772, %v772
    %v777 = vadd.f32 %v773, %v774
    %778 = vadd.xlane.f32.xlu0 %v777
    %v779 = vpop.xlane.xlu0 %778
    %v780 = vadd.f32 %v775, %v776
    %781 = vadd.xlane.f32.xlu0 %v780
    %v782 = vpop.xlane.xlu0 %781
    %v783 = vmul.f32 %v779, %v436
    %v784 = vmul.f32 %v782, %v436
    %v785 = vadd.f32 %v783, 1e-05
    %v786 = vadd.f32 %v784, 1e-05
    %v787 = vrsqrt.pop %v785
    %v788 = vmul.f32 %v787, %v785
    %v789 = vmul.f32 %v788, %v787
    %v790 = vmul.f32 0.5, %v789
    %v791 = vsub.f32 1.5, %v790
    %v792 = vmul.f32 %v787, %v791
    %vm793 = vweird.f32 %v785
    %vm794 = vweird.f32 %v787
    %vm795 = vmor %vm793, %vm794
    %v796 = vsel %vm795, %v787, %v792
    %v797 = vrsqrt.pop %v786
    %v798 = vmul.f32 %v797, %v786
    %v799 = vmul.f32 %v798, %v797
    %v800 = vmul.f32 0.5, %v799
    %v801 = vsub.f32 1.5, %v800
    %v802 = vmul.f32 %v797, %v801
    %vm803 = vweird.f32 %v786
    %vm804 = vweird.f32 %v797
    %vm805 = vmor %vm803, %vm804
    %v806 = vsel %vm805, %v797, %v802
    %v807 = vmul.f32 %v769, %v796
    %v808 = vmul.f32 %v770, %v796
    %v809 = vmul.f32 %v771, %v806
    %v810 = vmul.f32 %v772, %v806
    %v812 = vperm.slane %v759, 0
    %v813 = vperm.slane %v759, 1
    %v816 = vmul.f32 %v807, %v812
    %v817 = vmul.f32 %v808, %v813
    %v818 = vmul.f32 %v809, %v812
    %v819 = vmul.f32 %v810, %v813
    %v821 = vperm.slane %v760, 0
    %v822 = vperm.slane %v760, 1
    %v825 = vadd.f32 %v816, %v821
    %v826 = vadd.f32 %v817, %v822
    %v827 = vadd.f32 %v818, %v821
    %v828 = vadd.f32 %v819, %v822
    %v829 = vmax.f32 %v825, 0.0
    %v830 = vmax.f32 %v826, 0.0
    %v831 = vmax.f32 %v827, 0.0
    %v832 = vmax.f32 %v828, 0.0
    %v833 = vpack.c.bf16 %v831, %v829
    %v834 = vpack.c.bf16 %v832, %v830
    %v835 = vld [vmem:[#allocation13] sm:$0xff]
    %v836 = vld [vmem:[#allocation13 + $0x8] sm:$0xff]
    %v837 = vld [vmem:[#allocation13 + $0x10] sm:$0xff]
    %v838 = vld [vmem:[#allocation13 + $0x18] sm:$0xff]
    %v839 = vld [vmem:[#allocation13 + $0x20] sm:$0xff]
    %v840 = vld [vmem:[#allocation13 + $0x28] sm:$0xff]
    %v841 = vld [vmem:[#allocation13 + $0x30] sm:$0xff]
    %v842 = vld [vmem:[#allocation13 + $0x38] sm:$0xff]
    %v843 = vld [vmem:[#allocation13 + $0x40] sm:$0xff]
    %v844 = vld [vmem:[#allocation13 + $0x48] sm:$0xff]
    %v845 = vld [vmem:[#allocation13 + $0x50] sm:$0xff]
    %v846 = vld [vmem:[#allocation13 + $0x58] sm:$0xff]
    %v847 = vld [vmem:[#allocation13 + $0x60] sm:$0xff]
    %v848 = vld [vmem:[#allocation13 + $0x68] sm:$0xff]
    %v849 = vld [vmem:[#allocation13 + $0x70] sm:$0xff]
    %v850 = vld [vmem:[#allocation13 + $0x78] sm:$0xff]
    %v851 = vld [vmem:[#allocation13 + $0x80] sm:$0xff]
    %v852 = vld [vmem:[#allocation13 + $0x88] sm:$0xff]
    %v853 = vld [vmem:[#allocation13 + $0x90] sm:$0xff]
    %v854 = vld [vmem:[#allocation13 + $0x98] sm:$0xff]
    %v855 = vld [vmem:[#allocation13 + $0xa0] sm:$0xff]
    %v856 = vld [vmem:[#allocation13 + $0xa8] sm:$0xff]
    %v857 = vld [vmem:[#allocation13 + $0xb0] sm:$0xff]
    %v858 = vld [vmem:[#allocation13 + $0xb8] sm:$0xff]
    %v859 = vld [vmem:[#allocation13 + $0xc0] sm:$0xff]
    %v860 = vld [vmem:[#allocation13 + $0xc8] sm:$0xff]
    %v861 = vld [vmem:[#allocation13 + $0xd0] sm:$0xff]
    %v862 = vld [vmem:[#allocation13 + $0xd8] sm:$0xff]
    %v863 = vld [vmem:[#allocation13 + $0xe0] sm:$0xff]
    %v864 = vld [vmem:[#allocation13 + $0xe8] sm:$0xff]
    %v865 = vld [vmem:[#allocation13 + $0xf0] sm:$0xff]
    %v866 = vld [vmem:[#allocation13 + $0xf8] sm:$0xff]
    %v867 = vld [vmem:[%s10] sm:$0x3]
    %v869 = vperm.slane %v867, 0
    %v870 = vperm.slane %v867, 1
    %v905 = vunpack.c.l.b16 %v835
    %v906 = vunpack.c.h.b16 %v835
    %v907 = vunpack.c.l.b16 %v836
    %v908 = vunpack.c.h.b16 %v836
    %v909 = vunpack.c.l.b16 %v837
    %v910 = vunpack.c.h.b16 %v837
    %v911 = vunpack.c.l.b16 %v838
    %v912 = vunpack.c.h.b16 %v838
    %v913 = vunpack.c.l.b16 %v839
    %v914 = vunpack.c.h.b16 %v839
    %v915 = vunpack.c.l.b16 %v840
    %v916 = vunpack.c.h.b16 %v840
    %v917 = vunpack.c.l.b16 %v841
    %v918 = vunpack.c.h.b16 %v841
    %v919 = vunpack.c.l.b16 %v842
    %v920 = vunpack.c.h.b16 %v842
    %v921 = vunpack.c.l.b16 %v843
    %v922 = vunpack.c.h.b16 %v843
    %v923 = vunpack.c.l.b16 %v844
    %v924 = vunpack.c.h.b16 %v844
    %v925 = vunpack.c.l.b16 %v845
    %v926 = vunpack.c.h.b16 %v845
    %v927 = vunpack.c.l.b16 %v846
    %v928 = vunpack.c.h.b16 %v846
    %v929 = vunpack.c.l.b16 %v847
    %v930 = vunpack.c.h.b16 %v847
    %v931 = vunpack.c.l.b16 %v848
    %v932 = vunpack.c.h.b16 %v848
    %v933 = vunpack.c.l.b16 %v849
    %v934 = vunpack.c.h.b16 %v849
    %v935 = vunpack.c.l.b16 %v850
    %v936 = vunpack.c.h.b16 %v850
    %v937 = vunpack.c.l.b16 %v851
    %v938 = vunpack.c.h.b16 %v851
    %v939 = vunpack.c.l.b16 %v852
    %v940 = vunpack.c.h.b16 %v852
    %v941 = vunpack.c.l.b16 %v853
    %v942 = vunpack.c.h.b16 %v853
    %v943 = vunpack.c.l.b16 %v854
    %v944 = vunpack.c.h.b16 %v854
    %v945 = vunpack.c.l.b16 %v855
    %v946 = vunpack.c.h.b16 %v855
    %v947 = vunpack.c.l.b16 %v856
    %v948 = vunpack.c.h.b16 %v856
    %v949 = vunpack.c.l.b16 %v857
    %v950 = vunpack.c.h.b16 %v857
    %v951 = vunpack.c.l.b16 %v858
    %v952 = vunpack.c.h.b16 %v858
    %v953 = vunpack.c.l.b16 %v859
    %v954 = vunpack.c.h.b16 %v859
    %v955 = vunpack.c.l.b16 %v860
    %v956 = vunpack.c.h.b16 %v860
    %v957 = vunpack.c.l.b16 %v861
    %v958 = vunpack.c.h.b16 %v861
    %v959 = vunpack.c.l.b16 %v862
    %v960 = vunpack.c.h.b16 %v862
    %v961 = vunpack.c.l.b16 %v863
    %v962 = vunpack.c.h.b16 %v863
    %v963 = vunpack.c.l.b16 %v864
    %v964 = vunpack.c.h.b16 %v864
    %v965 = vunpack.c.l.b16 %v865
    %v966 = vunpack.c.h.b16 %v865
    %v967 = vunpack.c.l.b16 %v866
    %v968 = vunpack.c.h.b16 %v866
    %v969 = vpack.c.b16 %v907, %v905
    %v970 = vpack.c.b16 %v908, %v906
    %v971 = vpack.c.b16 %v911, %v909
    %v972 = vpack.c.b16 %v912, %v910
    %v973 = vpack.c.b16 %v915, %v913
    %v974 = vpack.c.b16 %v916, %v914
    %v975 = vpack.c.b16 %v919, %v917
    %v976 = vpack.c.b16 %v920, %v918
    %v977 = vpack.c.b16 %v923, %v921
    %v978 = vpack.c.b16 %v924, %v922
    %v979 = vpack.c.b16 %v927, %v925
    %v980 = vpack.c.b16 %v928, %v926
    %v981 = vpack.c.b16 %v931, %v929
    %v982 = vpack.c.b16 %v932, %v930
    %v983 = vpack.c.b16 %v935, %v933
    %v984 = vpack.c.b16 %v936, %v934
    %v985 = vpack.c.b16 %v939, %v937
    %v986 = vpack.c.b16 %v940, %v938
    %v987 = vpack.c.b16 %v943, %v941
    %v988 = vpack.c.b16 %v944, %v942
    %v989 = vpack.c.b16 %v947, %v945
    %v990 = vpack.c.b16 %v948, %v946
    %v991 = vpack.c.b16 %v951, %v949
    %v992 = vpack.c.b16 %v952, %v950
    %v993 = vpack.c.b16 %v955, %v953
    %v994 = vpack.c.b16 %v956, %v954
    %v995 = vpack.c.b16 %v959, %v957
    %v996 = vpack.c.b16 %v960, %v958
    %v997 = vpack.c.b16 %v963, %v961
    %v998 = vpack.c.b16 %v964, %v962
    %v999 = vpack.c.b16 %v967, %v965
    %v1000 = vpack.c.b16 %v968, %v966
    %1033 = vmatpush.bf16.msra.mxu0 %v983
    %1034 = vmatpush.bf16.msra.mxu0 %v981
    %1035 = vmatpush.bf16.msra.mxu0 %v979
    %1036 = vmatpush.bf16.msra.mxu0 %v977
    %1037 = vmatpush.bf16.msra.mxu0 %v975
    %1038 = vmatpush.bf16.msra.mxu0 %v973
    %1039 = vmatpush.bf16.msra.mxu0 %v971
    %1040 = vmatpush.bf16.msra.mxu0 %v969
    %1041 = vmatmul.bf16.gmra.mxu0 %v833
    %v1042 = vpop.f32.mrf.mxu0
    %v1043 = vadd.f32 %v869, %v1042
    %v1044 = vpop.f32.mrf.mxu0
    %v1045 = vadd.f32 %v869, %v1044
    %1046 = vdwg.mxu0
    %1047 = vmatpush.bf16.msra.mxu0 %v999
    %1048 = vmatpush.bf16.msra.mxu0 %v997
    %1049 = vmatpush.bf16.msra.mxu0 %v995
    %1050 = vmatpush.bf16.msra.mxu0 %v993
    %1051 = vmatpush.bf16.msra.mxu0 %v991
    %1052 = vmatpush.bf16.msra.mxu0 %v989
    %1053 = vmatpush.bf16.msra.mxu0 %v987
    %1054 = vmatpush.bf16.msra.mxu0 %v985
    %1055 = vmatmul.bf16.gmra.mxu0 %v834
    %v1056 = vpop.f32.mrf.mxu0
    %v1057 = vadd.f32 %v1043, %v1056
    %v1058 = vpop.f32.mrf.mxu0
    %v1059 = vadd.f32 %v1045, %v1058
    %1060 = vdwg.mxu0
    %1061 = vmatpush.bf16.msra.mxu0 %v984
    %1062 = vmatpush.bf16.msra.mxu0 %v982
    %1063 = vmatpush.bf16.msra.mxu0 %v980
    %1064 = vmatpush.bf16.msra.mxu0 %v978
    %1065 = vmatpush.bf16.msra.mxu0 %v976
    %1066 = vmatpush.bf16.msra.mxu0 %v974
    %1067 = vmatpush.bf16.msra.mxu0 %v972
    %1068 = vmatpush.bf16.msra.mxu0 %v970
    %1069 = vmatmul.bf16.gmra.mxu0 %v833
    %v1070 = vpop.f32.mrf.mxu0
    %v1071 = vadd.f32 %v870, %v1070
    %v1072 = vpop.f32.mrf.mxu0
    %v1073 = vadd.f32 %v870, %v1072
    %1074 = vdwg.mxu0
    %1075 = vmatpush.bf16.msra.mxu0 %v1000
    %1076 = vmatpush.bf16.msra.mxu0 %v998
    %1077 = vmatpush.bf16.msra.mxu0 %v996
    %1078 = vmatpush.bf16.msra.mxu0 %v994
    %1079 = vmatpush.bf16.msra.mxu0 %v992
    %1080 = vmatpush.bf16.msra.mxu0 %v990
    %1081 = vmatpush.bf16.msra.mxu0 %v988
    %1082 = vmatpush.bf16.msra.mxu0 %v986
    %1083 = vmatmul.bf16.gmra.mxu0 %v834
    %v1084 = vpop.f32.mrf.mxu0
    %v1085 = vadd.f32 %v1071, %v1084
    %v1086 = vpop.f32.mrf.mxu0
    %v1087 = vadd.f32 %v1073, %v1086
    %1088 = vdwg.mxu0
    %v1089 = vld [vmem:[%s11] sm:$0x3]
    %v1090 = vld [vmem:[#allocation14] sm:$0x3]
    %v1091 = vadd.f32 %v1057, %v1085
    %1092 = vadd.xlane.f32.xlu0 %v1091
    %v1093 = vpop.xlane.xlu0 %1092
    %v1094 = vadd.f32 %v1059, %v1087
    %1095 = vadd.xlane.f32.xlu0 %v1094
    %v1096 = vpop.xlane.xlu0 %1095
    %v1097 = vmul.f32 %v1093, %v436
    %v1098 = vmul.f32 %v1096, %v436
    %v1099 = vsub.f32 %v1057, %v1097
    %v1100 = vsub.f32 %v1085, %v1097
    %v1101 = vsub.f32 %v1059, %v1098
    %v1102 = vsub.f32 %v1087, %v1098
    %v1103 = vmul.f32 %v1099, %v1099
    %v1104 = vmul.f32 %v1100, %v1100
    %v1105 = vmul.f32 %v1101, %v1101
    %v1106 = vmul.f32 %v1102, %v1102
    %v1107 = vadd.f32 %v1103, %v1104
    %1108 = vadd.xlane.f32.xlu0 %v1107
    %v1109 = vpop.xlane.xlu0 %1108
    %v1110 = vadd.f32 %v1105, %v1106
    %1111 = vadd.xlane.f32.xlu0 %v1110
    %v1112 = vpop.xlane.xlu0 %1111
    %v1113 = vmul.f32 %v1109, %v436
    %v1114 = vmul.f32 %v1112, %v436
    %v1115 = vadd.f32 %v1113, 1e-05
    %v1116 = vadd.f32 %v1114, 1e-05
    %v1117 = vrsqrt.pop %v1115
    %v1118 = vmul.f32 %v1117, %v1115
    %v1119 = vmul.f32 %v1118, %v1117
    %v1120 = vmul.f32 0.5, %v1119
    %v1121 = vsub.f32 1.5, %v1120
    %v1122 = vmul.f32 %v1117, %v1121
    %vm1123 = vweird.f32 %v1115
    %vm1124 = vweird.f32 %v1117
    %vm1125 = vmor %vm1123, %vm1124
    %v1126 = vsel %vm1125, %v1117, %v1122
    %v1127 = vrsqrt.pop %v1116
    %v1128 = vmul.f32 %v1127, %v1116
    %v1129 = vmul.f32 %v1128, %v1127
    %v1130 = vmul.f32 0.5, %v1129
    %v1131 = vsub.f32 1.5, %v1130
    %v1132 = vmul.f32 %v1127, %v1131
    %vm1133 = vweird.f32 %v1116
    %vm1134 = vweird.f32 %v1127
    %vm1135 = vmor %vm1133, %vm1134
    %v1136 = vsel %vm1135, %v1127, %v1132
    %v1137 = vmul.f32 %v1099, %v1126
    %v1138 = vmul.f32 %v1100, %v1126
    %v1139 = vmul.f32 %v1101, %v1136
    %v1140 = vmul.f32 %v1102, %v1136
    %v1142 = vperm.slane %v1089, 0
    %v1143 = vperm.slane %v1089, 1
    %v1146 = vmul.f32 %v1137, %v1142
    %v1147 = vmul.f32 %v1138, %v1143
    %v1148 = vmul.f32 %v1139, %v1142
    %v1149 = vmul.f32 %v1140, %v1143
    %v1151 = vperm.slane %v1090, 0
    %v1152 = vperm.slane %v1090, 1
    %v1155 = vadd.f32 %v1146, %v1151
    %v1156 = vadd.f32 %v1147, %v1152
    %v1157 = vadd.f32 %v1148, %v1151
    %v1158 = vadd.f32 %v1149, %v1152
    %1159 = vst [vmem:[#allocation16] sm:$0xff] %v1155
    %1160 = vst [vmem:[#allocation16 + $0x8] sm:$0xff] %v1156
    %1161 = vst [vmem:[#allocation16 + $0x10] sm:$0xff] %v1157
    %1162 = vst [vmem:[#allocation16 + $0x18] sm:$0xff] %v1158
    // Predicated region
    $region86: #{tpu_custom_call.1} parent=1 // pred_check
      _
    $region87: #{tpu_custom_call.1} parent=1 // pred_check_branch
      %1164 = sbr.rel (0) target = $region89
    $region88: #{tpu_custom_call.1} parent=1 // pred_region
      %1166 = vsyncadd [#allocation4], 0
      %s1167 = sshll.u32 [#allocation16], 4
      %s1168 = int_to_ptr.vmem [resolvable:$true] %s1167
      %s1169 = sshll.u32 %s13, 4
      %s1170 = int_to_ptr.hbm [resolvable:$true] %s1169
      %1175 = dma.vmem_to_hbm [thread:$0]  %s1168, 512, %s1170, [#allocation4], 256, 256, 16
    $region89: #{tpu_custom_call.1} parent=1 // pred_fallthru
      _
    // Predicated region
    $region90: #{tpu_custom_call.1} parent=1 // pred_check
      _
    $region91: #{tpu_custom_call.1} parent=1 // pred_check_branch
      %1177 = sbr.rel (0) target = $region93
    $region92: #{tpu_custom_call.1} parent=1 // pred_region
      %1179 = dma.done [#allocation4], 512
    $region93: #{tpu_custom_call.1} parent=1 // pred_fallthru
      _
    %1180 = vsyncpa [#allocation3], 1
    %1181 = vsyncpa [#allocation6], 1
    %1182 = vsyncpa [#allocation9], 1
    %1183 = vsyncpa [#allocation12], 1
    %1184 = vsyncpa [#allocation15], 1
    %1185 = vsyncpa [#allocation4], 1

</llo_original>
